<compile_context>
chip_gen: v7x
topology: tpu7x:2x2x1
jax: 0.10.0
libtpu: 0.0.40
codegen_flags: <defaults>
</compile_context>

<pallas_src>
import functools
import math

import jax
import jax.numpy as jnp
from jax.experimental import pallas as pl
from jax.experimental.pallas import tpu as pltpu

IGNORE_LABEL = 255
THRESH = float(-math.log(0.7))       # same as -torch.log(torch.tensor(0.7))
AUX_WEIGHTS = [1, 1]
MAX_TILE = 4096                      # pixels per grid step (lane axis)


def _round_up(x, m):
    return ((x + m - 1) // m) * m


def _ohem_ce_kernel(logits_ref, labels_ref, loss_ref, hsum_ref, hcnt_ref, vcnt_ref,
                    *, hw, tile):
    """Per-pixel CE + OHEM vector-partial stats.

    logits_ref : (C, T)       classes on sublanes, pixels on lanes (native dtype)
    labels_ref : (1, T) i32
    loss_ref   : (1, T) f32   per-pixel loss (0 for ignored / out-of-bounds pixels)
    hsum_ref   : (1, T) f32   resident per-batch accumulators (per-lane partials):
    hcnt_ref   : (1, T) f32     sum of hard losses / #hard / #valid
    vcnt_ref   : (1, T) f32
    """
    i = pl.program_id(1)

    @pl.when(i == 0)
    def _():
        hsum_ref[...] = jnp.zeros_like(hsum_ref)
        hcnt_ref[...] = jnp.zeros_like(hcnt_ref)
        vcnt_ref[...] = jnp.zeros_like(vcnt_ref)

    logits = logits_ref[...].astype(jnp.float32)               # (C, T)
    labels = labels_ref[...]                                    # (1, T) int32

    # lane bounds mask for the ragged last tile (boundary reads are garbage)
    lane = jax.lax.broadcasted_iota(jnp.int32, (1, tile), 1)    # (1, T)
    in_bounds = (i * tile + lane) < hw

    # numerically stable log-softmax denominator: reduce over the C sublane rows
    m = jnp.max(logits, axis=0, keepdims=True)                  # (1, T)
    lse = m + jnp.log(jnp.sum(jnp.exp(logits - m), axis=0, keepdims=True))

    # gather logit at the label index via one-hot over the class (sublane) axis
    cls = jax.lax.broadcasted_iota(jnp.int32, logits.shape, 0)  # (C, T)
    picked = jnp.sum(jnp.where(cls == labels, logits, 0.0), axis=0, keepdims=True)

    valid = jnp.logical_and(labels != IGNORE_LABEL, in_bounds)  # (1, T)
    loss = jnp.where(valid, lse - picked, 0.0)                  # (1, T), no NaN leak
    loss_ref[...] = loss

    hard = loss > THRESH
    hsum_ref[...] += jnp.where(hard, loss, 0.0)
    hcnt_ref[...] += hard.astype(jnp.float32)
    vcnt_ref[...] += valid.astype(jnp.float32)


def _ohem_ce_pallas(logits, labels, tile):
    """logits: (N, C, HW) any float dtype, labels: (N, 1, HW) i32."""
    N, C, HW = logits.shape
    grid = (N, pl.cdiv(HW, tile))
    stat_shape = jax.ShapeDtypeStruct((N, 1, tile), jnp.float32)
    stat_spec = pl.BlockSpec((None, 1, tile), lambda n, i: (n, 0, 0))  # resident per-n
    kernel = functools.partial(_ohem_ce_kernel, hw=HW, tile=tile)
    return pl.pallas_call(
        kernel,
        out_shape=(
            jax.ShapeDtypeStruct((N, 1, HW), jnp.float32),
            stat_shape, stat_shape, stat_shape,
        ),
        grid_spec=pltpu.PrefetchScalarGridSpec(
            num_scalar_prefetch=0,
            grid=grid,
            in_specs=[
                pl.BlockSpec((None, C, tile), lambda n, i: (n, 0, i)),
                pl.BlockSpec((None, 1, tile), lambda n, i: (n, 0, i)),
            ],
            out_specs=[
                pl.BlockSpec((None, 1, tile), lambda n, i: (n, 0, i)),
                stat_spec, stat_spec, stat_spec,
            ],
        ),
        compiler_params=pltpu.CompilerParams(
            dimension_semantics=("parallel", "arbitrary")),
    )(logits, labels)


def _forward_single(preds, labels):
    """preds: (N, C, H, W) float, labels: (N, H, W) int -> scalar f32 loss."""
    N, C, H, W = preds.shape
    HW = H * W
    P = N * HW
    assert C <= IGNORE_LABEL, "ignore_label collides with a real class id"

    tile = min(MAX_TILE, _round_up(HW, 128))

    # free reshapes: keep NCHW, pixels go on the lane axis; keep native dtype
    # (cast to f32 happens in-register inside the kernel, not with an HBM pass)
    logits = preds.reshape(N, C, HW)
    lab = labels.reshape(N, 1, HW).astype(jnp.int32)

    loss_out, hsum, hcnt, vcnt = _ohem_ce_pallas(logits, lab, tile)

    loss = loss_out[:, 0, :].reshape(P)            # per-pixel loss, 0 for ignored

    sum_hard = jnp.sum(hsum)
    cnt_hard = jnp.sum(hcnt)
    cnt_valid = jnp.sum(vcnt)

    n_min = cnt_valid.astype(jnp.int32) // 16
    cnt_hard_i = cnt_hard.astype(jnp.int32)

    def _mean_topk(_):
        # top-k fallback with dynamic k: descending sort + masked prefix mean.
        # TODO(synk): dynamic-k top-k has no clean Pallas TPU primitive; done in JAX.
        sorted_desc = jnp.sort(loss)[::-1]
        s = jnp.sum(jnp.where(jnp.arange(P) < n_min, sorted_desc, 0.0))
        return s / jnp.maximum(n_min, 1).astype(jnp.float32)

    def _mean_hard(_):
        # guarded denominator (grad-safe); selected only when cnt_hard >= n_min
        return sum_hard / jnp.maximum(cnt_hard, 1.0)

    # sort only runs on the rare fallback path
    return jax.lax.cond(cnt_hard_i < n_min, _mean_topk, _mean_hard, None)


def ohem_cross_entropy(preds, labels, aux_weights=AUX_WEIGHTS):
    """Mirror of OhemCrossEntropy.forward (weight=None, ignore_label=255, thresh=0.7)."""
    if isinstance(preds, tuple):
        return sum(w * _forward_single(p, labels)
                   for p, w in zip(preds, aux_weights))
    return _forward_single(preds, labels)


def _reference(preds, labels):
    """Pure-JAX reference of the same forward (for sanity checking)."""
    N, C, H, W = preds.shape
    P = N * H * W
    logits = jnp.transpose(preds, (0, 2, 3, 1)).reshape(P, C).astype(jnp.float32)
    lab = labels.reshape(P).astype(jnp.int32)
    valid = lab != IGNORE_LABEL
    safe_lab = jnp.where(valid, lab, 0)
    logp = jax.nn.log_softmax(logits, axis=-1)
    nll = -jnp.take_along_axis(logp, safe_lab[:, None], axis=-1)[:, 0]
    loss = jnp.where(valid, nll, 0.0)
    n_min = jnp.sum(valid).astype(jnp.int32) // 16
    hard = loss > THRESH
    cnt_hard = jnp.sum(hard.astype(jnp.float32))
    mean_hard = jnp.sum(jnp.where(hard, loss, 0.0)) / jnp.maximum(cnt_hard, 1.0)
    sorted_desc = jnp.sort(loss)[::-1]
    topk_sum = jnp.sum(jnp.where(jnp.arange(P) < n_min, sorted_desc, 0.0))
    mean_topk = topk_sum / jnp.maximum(n_min, 1).astype(jnp.float32)
    return jnp.where(cnt_hard.astype(jnp.int32) < n_min, mean_topk, mean_hard)


if __name__ == "__main__":
    key = jax.random.PRNGKey(0)

    def make_inputs(k, N, C, H, W):
        k1, k2, k3 = jax.random.split(k, 3)
        preds = jax.random.normal(k1, (N, C, H, W), dtype=jnp.float32)
        labels = jax.random.randint(k2, (N, H, W), 0, C, dtype=jnp.int32)
        ignore_mask = jax.random.uniform(k3, (N, H, W)) < 0.2
        labels = jnp.where(ignore_mask, IGNORE_LABEL, labels)
        return preds, labels

    loss_fn = jax.jit(ohem_cross_entropy)

    # main config: batch=2, channels=4, spatial=16
    k0, k1, k2 = jax.random.split(key, 3)
    preds, labels = make_inputs(k0, 2, 4, 16, 16)
    out = jax.block_until_ready(loss_fn(preds, labels))
    ref = jax.block_until_ready(_reference(preds, labels))
    assert jnp.allclose(out, ref, rtol=1e-4, atol=1e-5), (out, ref)

    # second config exercises >1 pixel tile per batch index
    preds2, labels2 = make_inputs(k1, 1, 4, 48, 48)
    out2 = jax.block_until_ready(loss_fn(preds2, labels2))
    ref2 = jax.block_until_ready(_reference(preds2, labels2))
    assert jnp.allclose(out2, ref2, rtol=1e-4, atol=1e-5), (out2, ref2)

    # third config exercises the ragged lane tail (HW=100 < 128) and odd C
    preds3, labels3 = make_inputs(k2, 2, 5, 10, 10)
    out3 = jax.block_until_ready(loss_fn(preds3, labels3))
    ref3 = jax.block_until_ready(_reference(preds3, labels3))
    assert jnp.allclose(out3, ref3, rtol=1e-4, atol=1e-5), (out3, ref3)

    # tuple (aux outputs) path
    out_aux = jax.block_until_ready(loss_fn((preds, preds * 0.5), labels))
    assert jnp.isfinite(out_aux)

    print("KERNEL_OK")
</pallas_src>

<mosaic_0001>
module attributes {stable_mosaic.version = 11 : i64} {
  func.func @_ohem_ce_kernel(%arg0: i32, %arg1: i32, %arg2: memref<1x4x256xf32, #tpu.memory_space<vmem>>, %arg3: memref<1x1x256xi32, #tpu.memory_space<vmem>>, %arg4: memref<1x1x256xf32, #tpu.memory_space<vmem>>, %arg5: memref<1x1x256xf32, #tpu.memory_space<vmem>>, %arg6: memref<1x1x256xf32, #tpu.memory_space<vmem>>, %arg7: memref<1x1x256xf32, #tpu.memory_space<vmem>>) attributes {dimension_semantics = [#tpu.dimension_semantics<parallel>, #tpu.dimension_semantics<arbitrary>], iteration_bounds = array<i64: 2, 1>, scalar_prefetch = 0 : i64, scratch_operands = 0 : i64, tpu.core_type = #tpu.core_type<tc>, window_params = [{transform_indices = @transform_0, window_bounds = array<i64: 1, 4, 256>}, {transform_indices = @transform_1, window_bounds = array<i64: 1, 1, 256>}, {transform_indices = @transform_2, window_bounds = array<i64: 1, 1, 256>}, {transform_indices = @transform_3, window_bounds = array<i64: 1, 1, 256>}, {transform_indices = @transform_4, window_bounds = array<i64: 1, 1, 256>}, {transform_indices = @transform_5, window_bounds = array<i64: 1, 1, 256>}]} {
    %c0_i32 = arith.constant 0 : i32
    %0 = arith.cmpi eq, %arg1, %c0_i32 : i32
    %1 = arith.extui %0 : i1 to i32
    %c0_i32_0 = arith.constant 0 : i32
    %2 = arith.cmpi ne, %1, %c0_i32_0 : i32
    scf.if %2 {
      %cst_34 = arith.constant 0.000000e+00 : f32
      %64 = vector.broadcast %cst_34 : f32 to vector<1x256xf32>
      %c0_35 = arith.constant 0 : index
      %c0_36 = arith.constant 0 : index
      %c0_37 = arith.constant 0 : index
      %65 = vector.load %arg5[%c0_35, %c0_36, %c0_37] : memref<1x1x256xf32, #tpu.memory_space<vmem>>, vector<1x1x256xf32>
      %66 = vector.shape_cast %65 : vector<1x1x256xf32> to vector<1x256xf32>
      %67 = vector.shape_cast %64 : vector<1x256xf32> to vector<1x1x256xf32>
      tpu.vector_store %arg5[%c0_35, %c0_36, %c0_37], %67 {strides = array<i32>} : memref<1x1x256xf32, #tpu.memory_space<vmem>>, vector<1x1x256xf32>,
      %cst_38 = arith.constant 0.000000e+00 : f32
      %68 = vector.broadcast %cst_38 : f32 to vector<1x256xf32>
      %c0_39 = arith.constant 0 : index
      %c0_40 = arith.constant 0 : index
      %c0_41 = arith.constant 0 : index
      %69 = vector.load %arg6[%c0_39, %c0_40, %c0_41] : memref<1x1x256xf32, #tpu.memory_space<vmem>>, vector<1x1x256xf32>
      %70 = vector.shape_cast %69 : vector<1x1x256xf32> to vector<1x256xf32>
      %71 = vector.shape_cast %68 : vector<1x256xf32> to vector<1x1x256xf32>
      tpu.vector_store %arg6[%c0_39, %c0_40, %c0_41], %71 {strides = array<i32>} : memref<1x1x256xf32, #tpu.memory_space<vmem>>, vector<1x1x256xf32>,
      %cst_42 = arith.constant 0.000000e+00 : f32
      %72 = vector.broadcast %cst_42 : f32 to vector<1x256xf32>
      %c0_43 = arith.constant 0 : index
      %c0_44 = arith.constant 0 : index
      %c0_45 = arith.constant 0 : index
      %73 = vector.load %arg7[%c0_43, %c0_44, %c0_45] : memref<1x1x256xf32, #tpu.memory_space<vmem>>, vector<1x1x256xf32>
      %74 = vector.shape_cast %73 : vector<1x1x256xf32> to vector<1x256xf32>
      %75 = vector.shape_cast %72 : vector<1x256xf32> to vector<1x1x256xf32>
      tpu.vector_store %arg7[%c0_43, %c0_44, %c0_45], %75 {strides = array<i32>} : memref<1x1x256xf32, #tpu.memory_space<vmem>>, vector<1x1x256xf32>,
    } else {
    }
    %c0 = arith.constant 0 : index
    %c0_1 = arith.constant 0 : index
    %c0_2 = arith.constant 0 : index
    %3 = vector.load %arg2[%c0, %c0_1, %c0_2] : memref<1x4x256xf32, #tpu.memory_space<vmem>>, vector<1x4x256xf32>
    %4 = vector.shape_cast %3 : vector<1x4x256xf32> to vector<4x256xf32>
    %c0_3 = arith.constant 0 : index
    %c0_4 = arith.constant 0 : index
    %c0_5 = arith.constant 0 : index
    %5 = vector.load %arg3[%c0_3, %c0_4, %c0_5] : memref<1x1x256xi32, #tpu.memory_space<vmem>>, vector<1x1x256xi32>
    %6 = vector.shape_cast %5 : vector<1x1x256xi32> to vector<1x256xi32>
    %7 = tpu.iota {dimensions = array<i32: 1>} : vector<1x256xi32>
    %c256_i32 = arith.constant 256 : i32
    %8 = arith.muli %arg1, %c256_i32 : i32
    %9 = vector.broadcast %8 : i32 to vector<1x256xi32>
    %10 = arith.addi %9, %7 : vector<1x256xi32>
    %c256_i32_6 = arith.constant 256 : i32
    %11 = vector.broadcast %c256_i32_6 : i32 to vector<1x256xi32>
    %12 = arith.cmpi slt, %10, %11 : vector<1x256xi32>
    %cst = arith.constant dense<0xFF800000> : vector<256xf32>
    %13 = vector.multi_reduction <maximumf>, %4, %cst [0] : vector<4x256xf32> to vector<256xf32>
    %14 = vector.shape_cast %13 : vector<256xf32> to vector<1x256xf32>
    %15 = vector.broadcast %14 : vector<1x256xf32> to vector<4x256xf32>
    %16 = arith.subf %4, %15 : vector<4x256xf32>
    %17 = math.exp %16 : vector<4x256xf32>
    %cst_7 = arith.constant dense<0.000000e+00> : vector<256xf32>
    %18 = vector.multi_reduction <add>, %17, %cst_7 [0] : vector<4x256xf32> to vector<256xf32>
    %19 = vector.shape_cast %18 : vector<256xf32> to vector<1x256xf32>
    %20 = math.log %19 : vector<1x256xf32>
    %21 = arith.addf %14, %20 : vector<1x256xf32>
    %22 = tpu.iota {dimensions = array<i32: 0>} : vector<4x256xi32>
    %23 = vector.broadcast %6 : vector<1x256xi32> to vector<4x256xi32>
    %24 = arith.cmpi eq, %22, %23 : vector<4x256xi32>
    %cst_8 = arith.constant 0.000000e+00 : f32
    %25 = vector.broadcast %cst_8 : f32 to vector<4x256xf32>
    %26 = arith.select %24, %4, %25 : vector<4x256xi1>, vector<4x256xf32>
    %cst_9 = arith.constant dense<0.000000e+00> : vector<256xf32>
    %27 = vector.multi_reduction <add>, %26, %cst_9 [0] : vector<4x256xf32> to vector<256xf32>
    %28 = vector.shape_cast %27 : vector<256xf32> to vector<1x256xf32>
    %c255_i32 = arith.constant 255 : i32
    %29 = vector.broadcast %c255_i32 : i32 to vector<1x256xi32>
    %30 = arith.cmpi ne, %6, %29 : vector<1x256xi32>
    %31 = arith.andi %30, %12 : vector<1x256xi1>
    %32 = arith.subf %21, %28 : vector<1x256xf32>
    %cst_10 = arith.constant 0.000000e+00 : f32
    %33 = vector.broadcast %cst_10 : f32 to vector<1x256xf32>
    %34 = arith.select %31, %32, %33 : vector<1x256xi1>, vector<1x256xf32>
    %c0_11 = arith.constant 0 : index
    %c0_12 = arith.constant 0 : index
    %c0_13 = arith.constant 0 : index
    %35 = vector.load %arg4[%c0_11, %c0_12, %c0_13] : memref<1x1x256xf32, #tpu.memory_space<vmem>>, vector<1x1x256xf32>
    %36 = vector.shape_cast %35 : vector<1x1x256xf32> to vector<1x256xf32>
    %37 = vector.shape_cast %34 : vector<1x256xf32> to vector<1x1x256xf32>
    tpu.vector_store %arg4[%c0_11, %c0_12, %c0_13], %37 {strides = array<i32>} : memref<1x1x256xf32, #tpu.memory_space<vmem>>, vector<1x1x256xf32>,
    %cst_14 = arith.constant 0.356674939 : f32
    %38 = vector.broadcast %cst_14 : f32 to vector<1x256xf32>
    %39 = arith.cmpf ogt, %34, %38 : vector<1x256xf32>
    %c0_15 = arith.constant 0 : index
    %c0_16 = arith.constant 0 : index
    %c0_17 = arith.constant 0 : index
    %40 = vector.load %arg5[%c0_15, %c0_16, %c0_17] : memref<1x1x256xf32, #tpu.memory_space<vmem>>, vector<1x1x256xf32>
    %41 = vector.shape_cast %40 : vector<1x1x256xf32> to vector<1x256xf32>
    %cst_18 = arith.constant 0.000000e+00 : f32
    %42 = vector.broadcast %cst_18 : f32 to vector<1x256xf32>
    %43 = arith.select %39, %34, %42 : vector<1x256xi1>, vector<1x256xf32>
    %44 = arith.addf %41, %43 : vector<1x256xf32>
    %c0_19 = arith.constant 0 : index
    %c0_20 = arith.constant 0 : index
    %c0_21 = arith.constant 0 : index
    %45 = vector.load %arg5[%c0_19, %c0_20, %c0_21] : memref<1x1x256xf32, #tpu.memory_space<vmem>>, vector<1x1x256xf32>
    %46 = vector.shape_cast %45 : vector<1x1x256xf32> to vector<1x256xf32>
    %47 = vector.shape_cast %44 : vector<1x256xf32> to vector<1x1x256xf32>
    tpu.vector_store %arg5[%c0_19, %c0_20, %c0_21], %47 {strides = array<i32>} : memref<1x1x256xf32, #tpu.memory_space<vmem>>, vector<1x1x256xf32>,
    %c0_22 = arith.constant 0 : index
    %c0_23 = arith.constant 0 : index
    %c0_24 = arith.constant 0 : index
    %48 = vector.load %arg6[%c0_22, %c0_23, %c0_24] : memref<1x1x256xf32, #tpu.memory_space<vmem>>, vector<1x1x256xf32>
    %49 = vector.shape_cast %48 : vector<1x1x256xf32> to vector<1x256xf32>
    %50 = arith.extui %39 : vector<1x256xi1> to vector<1x256xi32>
    %51 = arith.sitofp %50 : vector<1x256xi32> to vector<1x256xf32>
    %52 = arith.addf %49, %51 : vector<1x256xf32>
    %c0_25 = arith.constant 0 : index
    %c0_26 = arith.constant 0 : index
    %c0_27 = arith.constant 0 : index
    %53 = vector.load %arg6[%c0_25, %c0_26, %c0_27] : memref<1x1x256xf32, #tpu.memory_space<vmem>>, vector<1x1x256xf32>
    %54 = vector.shape_cast %53 : vector<1x1x256xf32> to vector<1x256xf32>
    %55 = vector.shape_cast %52 : vector<1x256xf32> to vector<1x1x256xf32>
    tpu.vector_store %arg6[%c0_25, %c0_26, %c0_27], %55 {strides = array<i32>} : memref<1x1x256xf32, #tpu.memory_space<vmem>>, vector<1x1x256xf32>,
    %c0_28 = arith.constant 0 : index
    %c0_29 = arith.constant 0 : index
    %c0_30 = arith.constant 0 : index
    %56 = vector.load %arg7[%c0_28, %c0_29, %c0_30] : memref<1x1x256xf32, #tpu.memory_space<vmem>>, vector<1x1x256xf32>
    %57 = vector.shape_cast %56 : vector<1x1x256xf32> to vector<1x256xf32>
    %58 = arith.extui %31 : vector<1x256xi1> to vector<1x256xi32>
    %59 = arith.sitofp %58 : vector<1x256xi32> to vector<1x256xf32>
    %60 = arith.addf %57, %59 : vector<1x256xf32>
    %c0_31 = arith.constant 0 : index
    %c0_32 = arith.constant 0 : index
    %c0_33 = arith.constant 0 : index
    %61 = vector.load %arg7[%c0_31, %c0_32, %c0_33] : memref<1x1x256xf32, #tpu.memory_space<vmem>>, vector<1x1x256xf32>
    %62 = vector.shape_cast %61 : vector<1x1x256xf32> to vector<1x256xf32>
    %63 = vector.shape_cast %60 : vector<1x256xf32> to vector<1x1x256xf32>
    tpu.vector_store %arg7[%c0_31, %c0_32, %c0_33], %63 {strides = array<i32>} : memref<1x1x256xf32, #tpu.memory_space<vmem>>, vector<1x1x256xf32>,
    return
  }
  func.func @transform_0(%arg0: i32, %arg1: i32) -> (i32, i32, i32) {
    %c0_i32 = arith.constant 0 : i32
    %c0_i32_0 = arith.constant 0 : i32
    return %arg0, %c0_i32, %arg1 : i32, i32, i32
  }
  func.func @transform_1(%arg0: i32, %arg1: i32) -> (i32, i32, i32) {
    %c0_i32 = arith.constant 0 : i32
    %c0_i32_0 = arith.constant 0 : i32
    return %arg0, %c0_i32, %arg1 : i32, i32, i32
  }
  func.func @transform_2(%arg0: i32, %arg1: i32) -> (i32, i32, i32) {
    %c0_i32 = arith.constant 0 : i32
    %c0_i32_0 = arith.constant 0 : i32
    return %arg0, %c0_i32, %arg1 : i32, i32, i32
  }
  func.func @transform_3(%arg0: i32, %arg1: i32) -> (i32, i32, i32) {
    %c0_i32 = arith.constant 0 : i32
    %c0_i32_0 = arith.constant 0 : i32
    %c0_i32_1 = arith.constant 0 : i32
    return %arg0, %c0_i32, %c0_i32_0 : i32, i32, i32
  }
  func.func @transform_4(%arg0: i32, %arg1: i32) -> (i32, i32, i32) {
    %c0_i32 = arith.constant 0 : i32
    %c0_i32_0 = arith.constant 0 : i32
    %c0_i32_1 = arith.constant 0 : i32
    return %arg0, %c0_i32, %c0_i32_0 : i32, i32, i32
  }
  func.func @transform_5(%arg0: i32, %arg1: i32) -> (i32, i32, i32) {
    %c0_i32 = arith.constant 0 : i32
    %c0_i32_0 = arith.constant 0 : i32
    %c0_i32_1 = arith.constant 0 : i32
    return %arg0, %c0_i32, %c0_i32_0 : i32, i32, i32
  }
}

</mosaic_0001>

<llo_original>
// kernel: ohem_cross_entropy.1
$region0: #{ohem_cross_entropy.1}
  #allocation0 [shape = 'u32[]', space=smem, size = 0x4, offset = 0x4, fixed_abs, tag = 'smem constant byte address 0x4 - core index']
  #allocation1 [shape = 'u32[144,128]{1,0:T(1,128)}', space=vmem, size = 0x12000, scoped, tag = 'internal scratch']
  %s0 = inlined_call_operand.vmem [shape: f32[2,4,256], index: 0, kind: input, shape index: {}]
  %s1 = inlined_call_operand.vmem [shape: s32[2,1,256], index: 1, kind: input, shape index: {}]
  %s2 = inlined_call_operand.vmem [shape: f32[2,1,256], index: 2, kind: output, shape index: {0}]
  %s3 = inlined_call_operand.vmem [shape: f32[2,1,256], index: 3, kind: output, shape index: {1}]
  %s4 = inlined_call_operand.vmem [shape: f32[2,1,256], index: 4, kind: output, shape index: {2}]
  %s5 = inlined_call_operand.vmem [shape: f32[2,1,256], index: 5, kind: output, shape index: {3}]
  %6 = xla_tuple %s2, %s3, %s4, %s5
  %s7 = sld [smem:[#allocation0]]
  $region69: #{ohem_cross_entropy.1} parent=0
    _
  %s9 = ssub.s32 1, %s7
  %s10 = scalar_select 0, %s9, %s7
  loop: start=0, step=1, limit=4
  $region2: #{ohem_cross_entropy.1} parent=0 // loop_pre_header
    _
  $region3: #{ohem_cross_entropy.1} parent=0 // loop_header
    %s12 = sphi 0, %s16
    %p13 = scmp.ge.s32.totalorder %s12, 4
    %s19 = sphi 0, %s31
    %s20 = sphi 0, %s27
    %s21 = sphi 0, %s19
    %s22 = sphi 0, %s20
    %s23 = sphi 0, %s21
    %s24 = sphi 0, %s22
    %s36 = sphi 0, %s38
    %s39 = sphi 0, %s36
    %s40 = sphi 0, %s39
    %s56 = sphi 0, %s40
    %s64 = sphi 0, %s66
    %s67 = sphi 0, %s64
    %s68 = sphi 0, %s67
    %s84 = sphi 0, %s68
    %s92 = sphi 0, %s94
    %s95 = sphi 0, %s92
    %s96 = sphi 0, %s95
    %s112 = sphi 0, %s96
    %s118 = sphi 0, %s120
    %s121 = sphi 0, %s118
    %s122 = sphi 0, %s121
    %s138 = sphi 0, %s122
    %s144 = sphi 0, %s146
    %s147 = sphi 0, %s144
    %s148 = sphi 0, %s147
    %s164 = sphi 0, %s148
    %s170 = sphi 0, %s172
    %s173 = sphi 0, %s170
    %s174 = sphi 0, %s173
    %s190 = sphi 0, %s174
  $region4: #{ohem_cross_entropy.1} parent=0 // loop_header_branch
    %15 = sbr.rel (%p13) target = $region8
  $region5: #{ohem_cross_entropy.1} parent=0 // loop_body
    %s17 = ssub.s32 %s12, 1
    %s18 = ssub.s32 %s12, 2
    %s25 = sadd.s32 1, %s20
    %p26 = scmp.ge.s32.totalorder %s25, 1
    %s27 = scalar_select %p26, 0, %s25
    %s28 = sadd.s32 1, %s19
    %s29 = scalar_select %p26, %s28, %s19
    %p30 = scmp.ge.s32.totalorder %s29, 2
    %s31 = scalar_select %p30, 0, %s29
    %s32 = ssub.s32 %s19, %s31
    %s33 = ssub.s32 %s20, %s27
    %s34 = sor.u32 %s32, %s33
    %p35 = scmp.eq.s32.totalorder %s34, 0
    %s37 = sadd.s32 %s36, 1
    %s38 = scalar_select %p35, %s36, %s37
    %p41 = pneg %p35
    %p42 = scmp.eq.s32.totalorder %s12, 1
    %p43 = por %p41, %p42
    %p44 = scmp.ne.s32.totalorder %s36, %s39
    %p45 = scmp.eq.s32.totalorder %s12, 0
    %p46 = por %p44, %p45
    %p47 = scmp.ne.s32.totalorder %s36, %s39
    %p48 = scmp.eq.s32.totalorder %s17, 1
    %p49 = por %p47, %p48
    %p50 = scmp.ne.s32.totalorder %s39, %s40
    %p51 = scmp.eq.s32.totalorder %s17, 0
    %p52 = por %p50, %p51
    %p53 = scmp.ne.s32.totalorder %s39, %s40
    %p54 = scmp.eq.s32.totalorder %s18, 1
    %p55 = por %p53, %p54
    %p57 = scmp.ne.s32.totalorder %s40, %s56
    %p58 = scmp.eq.s32.totalorder %s18, 0
    %p59 = por %p57, %p58
    %s60 = ssub.s32 %s19, %s31
    %s61 = ssub.s32 %s20, %s27
    %s62 = sor.u32 %s60, %s61
    %p63 = scmp.eq.s32.totalorder %s62, 0
    %s65 = sadd.s32 %s64, 1
    %s66 = scalar_select %p63, %s64, %s65
    %p69 = pneg %p63
    %p70 = scmp.eq.s32.totalorder %s12, 1
    %p71 = por %p69, %p70
    %p72 = scmp.ne.s32.totalorder %s64, %s67
    %p73 = scmp.eq.s32.totalorder %s12, 0
    %p74 = por %p72, %p73
    %p75 = scmp.ne.s32.totalorder %s64, %s67
    %p76 = scmp.eq.s32.totalorder %s17, 1
    %p77 = por %p75, %p76
    %p78 = scmp.ne.s32.totalorder %s67, %s68
    %p79 = scmp.eq.s32.totalorder %s17, 0
    %p80 = por %p78, %p79
    %p81 = scmp.ne.s32.totalorder %s67, %s68
    %p82 = scmp.eq.s32.totalorder %s18, 1
    %p83 = por %p81, %p82
    %p85 = scmp.ne.s32.totalorder %s68, %s84
    %p86 = scmp.eq.s32.totalorder %s18, 0
    %p87 = por %p85, %p86
    %s88 = ssub.s32 %s19, %s31
    %s89 = ssub.s32 %s20, %s27
    %s90 = sor.u32 %s88, %s89
    %p91 = scmp.eq.s32.totalorder %s90, 0
    %s93 = sadd.s32 %s92, 1
    %s94 = scalar_select %p91, %s92, %s93
    %p97 = pneg %p91
    %p98 = scmp.eq.s32.totalorder %s12, 1
    %p99 = por %p97, %p98
    %p100 = scmp.ne.s32.totalorder %s92, %s95
    %p101 = scmp.eq.s32.totalorder %s12, 0
    %p102 = por %p100, %p101
    %p103 = scmp.ne.s32.totalorder %s92, %s95
    %p104 = scmp.eq.s32.totalorder %s17, 1
    %p105 = por %p103, %p104
    %p106 = scmp.ne.s32.totalorder %s95, %s96
    %p107 = scmp.eq.s32.totalorder %s17, 0
    %p108 = por %p106, %p107
    %p109 = scmp.ne.s32.totalorder %s95, %s96
    %p110 = scmp.eq.s32.totalorder %s18, 1
    %p111 = por %p109, %p110
    %p113 = scmp.ne.s32.totalorder %s96, %s112
    %p114 = scmp.eq.s32.totalorder %s18, 0
    %p115 = por %p113, %p114
    %s116 = ssub.s32 %s19, %s31
    %p117 = scmp.eq.s32.totalorder %s116, 0
    %s119 = sadd.s32 %s118, 1
    %s120 = scalar_select %p117, %s118, %s119
    %p123 = pneg %p117
    %p124 = scmp.eq.s32.totalorder %s12, 1
    %p125 = por %p123, %p124
    %p126 = scmp.ne.s32.totalorder %s118, %s121
    %p127 = scmp.eq.s32.totalorder %s12, 0
    %p128 = por %p126, %p127
    %p129 = scmp.ne.s32.totalorder %s118, %s121
    %p130 = scmp.eq.s32.totalorder %s17, 1
    %p131 = por %p129, %p130
    %p132 = scmp.ne.s32.totalorder %s121, %s122
    %p133 = scmp.eq.s32.totalorder %s17, 0
    %p134 = por %p132, %p133
    %p135 = scmp.ne.s32.totalorder %s121, %s122
    %p136 = scmp.eq.s32.totalorder %s18, 1
    %p137 = por %p135, %p136
    %p139 = scmp.ne.s32.totalorder %s122, %s138
    %p140 = scmp.eq.s32.totalorder %s18, 0
    %p141 = por %p139, %p140
    %s142 = ssub.s32 %s19, %s31
    %p143 = scmp.eq.s32.totalorder %s142, 0
    %s145 = sadd.s32 %s144, 1
    %s146 = scalar_select %p143, %s144, %s145
    %p149 = pneg %p143
    %p150 = scmp.eq.s32.totalorder %s12, 1
    %p151 = por %p149, %p150
    %p152 = scmp.ne.s32.totalorder %s144, %s147
    %p153 = scmp.eq.s32.totalorder %s12, 0
    %p154 = por %p152, %p153
    %p155 = scmp.ne.s32.totalorder %s144, %s147
    %p156 = scmp.eq.s32.totalorder %s17, 1
    %p157 = por %p155, %p156
    %p158 = scmp.ne.s32.totalorder %s147, %s148
    %p159 = scmp.eq.s32.totalorder %s17, 0
    %p160 = por %p158, %p159
    %p161 = scmp.ne.s32.totalorder %s147, %s148
    %p162 = scmp.eq.s32.totalorder %s18, 1
    %p163 = por %p161, %p162
    %p165 = scmp.ne.s32.totalorder %s148, %s164
    %p166 = scmp.eq.s32.totalorder %s18, 0
    %p167 = por %p165, %p166
    %s168 = ssub.s32 %s19, %s31
    %p169 = scmp.eq.s32.totalorder %s168, 0
    %s171 = sadd.s32 %s170, 1
    %s172 = scalar_select %p169, %s170, %s171
    %p175 = pneg %p169
    %p176 = scmp.eq.s32.totalorder %s12, 1
    %p177 = por %p175, %p176
    %p178 = scmp.ne.s32.totalorder %s170, %s173
    %p179 = scmp.eq.s32.totalorder %s12, 0
    %p180 = por %p178, %p179
    %p181 = scmp.ne.s32.totalorder %s170, %s173
    %p182 = scmp.eq.s32.totalorder %s17, 1
    %p183 = por %p181, %p182
    %p184 = scmp.ne.s32.totalorder %s173, %s174
    %p185 = scmp.eq.s32.totalorder %s17, 0
    %p186 = por %p184, %p185
    %p187 = scmp.ne.s32.totalorder %s173, %s174
    %p188 = scmp.eq.s32.totalorder %s18, 1
    %p189 = por %p187, %p188
    %p191 = scmp.ne.s32.totalorder %s174, %s190
    %p192 = scmp.eq.s32.totalorder %s18, 0
    %p193 = por %p191, %p192
    %p194 = scmp.le.s32.totalorder 1, %s12
    %p195 = scmp.lt.s32.totalorder %s12, 3
    %p196 = pnand %p194, %p195
    %p197 = pneg %p196
    // Predicated region
    $region9: #{ohem_cross_entropy.1} parent=5 // pred_check
      _
    $region10: #{ohem_cross_entropy.1} parent=5 // pred_check_branch
      %199 = sbr.rel (%p196) target = $region12
    $region11: #{ohem_cross_entropy.1} parent=5 // pred_region
      %s200 = ssub.s32 %s12, 1
    $region12: #{ohem_cross_entropy.1} parent=5 // pred_fallthru
      _
    %p201 = scmp.lt.s32.totalorder %s12, 2
    // Predicated region
    $region13: #{ohem_cross_entropy.1} parent=5 // pred_check
      %p202 = pneg %p201
    $region14: #{ohem_cross_entropy.1} parent=5 // pred_check_branch
      %204 = sbr.rel (%p202) target = $region16
    $region15: #{ohem_cross_entropy.1} parent=5 // pred_region
      // Predicated region
      $region17: #{ohem_cross_entropy.1} parent=15 // pred_check
        %p205 = pneg %p46
      $region18: #{ohem_cross_entropy.1} parent=15 // pred_check_branch
        %207 = sbr.rel (%p205) target = $region20
      $region19: #{ohem_cross_entropy.1} parent=15 // pred_region
        %s208 = smul.u32 2, %s20
        %p209 = scmp.lt.s32.totalorder %s19, 1
        %s210 = scalar_select %p209, %s19, 1
        %p211 = scmp.lt.s32.totalorder %s208, 1
        %s212 = scalar_select %p211, %s208, 1
        %s213 = smul.addr %s210, 2
        %s214 = sadd.s32 %s212, %s213
        %s215 = smul.addr %s214, 4
        %s216 = scalar_lea.vmem %s0, %s215
        %s217 = smul.u32 2, %s20
      $region20: #{ohem_cross_entropy.1} parent=15 // pred_fallthru
        _
      // Predicated region
      $region21: #{ohem_cross_entropy.1} parent=15 // pred_check
        %p218 = pneg %p74
      $region22: #{ohem_cross_entropy.1} parent=15 // pred_check_branch
        %220 = sbr.rel (%p218) target = $region24
      $region23: #{ohem_cross_entropy.1} parent=15 // pred_region
        %s221 = smul.u32 2, %s20
        %p222 = scmp.lt.s32.totalorder %s19, 1
        %s223 = scalar_select %p222, %s19, 1
        %p224 = scmp.lt.s32.totalorder %s221, 1
        %s225 = scalar_select %p224, %s221, 1
        %s226 = smul.addr %s223, 2
        %s227 = sadd.s32 %s225, %s226
        %s228 = scalar_lea.vmem %s1, %s227
        %s229 = smul.u32 2, %s20
      $region24: #{ohem_cross_entropy.1} parent=15 // pred_fallthru
        _
    $region16: #{ohem_cross_entropy.1} parent=5 // pred_fallthru
      _
    %p230 = scmp.le.s32.totalorder 1, %s12
    %p231 = scmp.lt.s32.totalorder %s12, 3
    %p232 = pnand %p230, %p231
    %p233 = pneg %p232
    // Predicated region
    $region25: #{ohem_cross_entropy.1} parent=5 // pred_check
      _
    $region26: #{ohem_cross_entropy.1} parent=5 // pred_check_branch
      %235 = sbr.rel (%p232) target = $region28
    $region27: #{ohem_cross_entropy.1} parent=5 // pred_region
      %s236 = ssub.s32 %s12, 1
      %s237 = smul.u32 2, %s22
      %p238 = scmp.lt.s32.totalorder %s21, 1
      %s239 = scalar_select %p238, %s21, 1
      %p240 = scmp.lt.s32.totalorder %s237, 1
      %s241 = scalar_select %p240, %s237, 1
      %s242 = smul.addr %s239, 2
      %s243 = sadd.s32 %s241, %s242
      %s244 = smul.addr %s243, 4
      %s245 = scalar_lea.vmem %s0, %s244
      %p246 = pneg %p52
      %p247 = pneg %p49
      %s248 = smul.u32 2, %s22
      %p249 = scmp.lt.s32.totalorder %s21, 1
      %s250 = scalar_select %p249, %s21, 1
      %p251 = scmp.lt.s32.totalorder %s248, 1
      %s252 = scalar_select %p251, %s248, 1
      %s253 = smul.addr %s250, 2
      %s254 = sadd.s32 %s252, %s253
      %s255 = scalar_lea.vmem %s1, %s254
      %p256 = pneg %p80
      %p257 = pneg %p77
      %p258 = pneg %p108
      %p259 = pneg %p105
      %s260 = smul.u32 2, %s22
      %p261 = scmp.lt.s32.totalorder %s21, 1
      %s262 = scalar_select %p261, %s21, 1
      %p263 = scmp.lt.s32.totalorder %s260, 1
      %s264 = scalar_select %p263, %s260, 1
      %s265 = smul.addr %s262, 2
      %s266 = sadd.s32 %s264, %s265
      %s267 = scalar_lea.vmem %s2, %s266
      %p268 = pneg %p134
      %p269 = pneg %p131
      %p270 = scmp.lt.s32.totalorder %s21, 1
      %s271 = scalar_select %p270, %s21, 1
      %s272 = smul.addr %s271, 2
      %s273 = scalar_lea.vmem %s3, %s272
      %p274 = pneg %p160
      %p275 = pneg %p157
      %p276 = scmp.lt.s32.totalorder %s21, 1
      %s277 = scalar_select %p276, %s21, 1
      %s278 = smul.addr %s277, 2
      %s279 = scalar_lea.vmem %s4, %s278
      %p280 = pneg %p186
      %p281 = pneg %p183
      %p282 = scmp.lt.s32.totalorder %s21, 1
      %s283 = scalar_select %p282, %s21, 1
      %s284 = smul.addr %s283, 2
      %s285 = scalar_lea.vmem %s5, %s284
      %s286 = smul.u32 2, %s22
      %p287 = scmp.lt.s32.totalorder %s21, 1
      %s288 = scalar_select %p287, %s21, 1
      %p289 = scmp.lt.s32.totalorder %s286, 1
      %s290 = scalar_select %p289, %s286, 1
      %s291 = smul.addr %s288, 2
      %s292 = sadd.s32 %s290, %s291
      %s293 = smul.addr %s292, 4
      %s294 = scalar_lea.vmem %s0, %s293
      %s295 = smul.u32 2, %s22
      %s296 = smul.u32 2, %s22
      %p297 = scmp.lt.s32.totalorder %s21, 1
      %s298 = scalar_select %p297, %s21, 1
      %p299 = scmp.lt.s32.totalorder %s296, 1
      %s300 = scalar_select %p299, %s296, 1
      %s301 = smul.addr %s298, 2
      %s302 = sadd.s32 %s300, %s301
      %s303 = scalar_lea.vmem %s1, %s302
      %s304 = smul.u32 2, %s22
      %s305 = smul.u32 2, %s22
      %p306 = scmp.lt.s32.totalorder %s21, 1
      %s307 = scalar_select %p306, %s21, 1
      %p308 = scmp.lt.s32.totalorder %s305, 1
      %s309 = scalar_select %p308, %s305, 1
      %s310 = smul.addr %s307, 2
      %s311 = sadd.s32 %s309, %s310
      %s312 = scalar_lea.vmem %s2, %s311
      %s313 = smul.u32 2, %s22
      %p314 = scmp.lt.s32.totalorder %s21, 1
      %s315 = scalar_select %p314, %s21, 1
      %s316 = smul.addr %s315, 2
      %s317 = scalar_lea.vmem %s3, %s316
      %p318 = scmp.lt.s32.totalorder %s21, 1
      %s319 = scalar_select %p318, %s21, 1
      %s320 = smul.addr %s319, 2
      %s321 = scalar_lea.vmem %s4, %s320
      %p322 = scmp.lt.s32.totalorder %s21, 1
      %s323 = scalar_select %p322, %s21, 1
      %s324 = smul.addr %s323, 2
      %s325 = scalar_lea.vmem %s5, %s324
      %p326 = scmp.eq.s32.totalorder %s22, 0
      // Predicated region
      $region29: #{ohem_cross_entropy.1} parent=27 // pred_check
        %p327 = pneg %p326
      $region30: #{ohem_cross_entropy.1} parent=27 // pred_check_branch
        %329 = sbr.rel (%p327) target = $region32
      $region31: #{ohem_cross_entropy.1} parent=27 // pred_region
        %v330 = vlaneseq
        %vm331 = vcmp.ge.s32.totalorder %v330, 0
        %vm332 = vcmp.lt.s32.totalorder %v330, 256
        %vm333 = vmand %vm331, %vm332
        %334 = vst.msk [vmem:[%s317] sm:$0x3] %vm333, 0.0
        %335 = vst.msk [vmem:[%s321] sm:$0x3] %vm333, 0.0
        %336 = vst.msk [vmem:[%s325] sm:$0x3] %vm333, 0.0
      $region32: #{ohem_cross_entropy.1} parent=27 // pred_fallthru
        _
      %v337 = vld [vmem:[%s294] sm:$0xff]
      %v338 = vld [vmem:[%s303] sm:$0x3]
      %v339 = vlaneseq
      %v340 = vand.u32 %v339, 127
      %v341 = vadd.s32 %v340, 128
      %s342 = smul.u32 %s22, 256
      %v343 = vstv %s342
      %v344 = vadd.s32 %v343, %v340
      %v345 = vadd.s32 %v343, %v341
      %vm346 = vcmp.lt.s32.totalorder %v344, 256
      %vm347 = vcmp.lt.s32.totalorder %v345, 256
      %v349 = vcombine.high %v337, %v337
      %vm351 = vcmask 1043456
      %v352 = vsel %vm351, %v337, -inf
      %v353 = vrot.slane %v352, 4
      %v354 = vmax.f32 %v352, %v353
      %v355 = vrot.slane %v354, 2
      %v356 = vmax.f32 %v354, %v355
      %v357 = vrot.slane %v356, 1
      %v358 = vmax.f32 %v356, %v357
      %v359 = vsel %vm351, %v349, -inf
      %v360 = vrot.slane %v359, 4
      %v361 = vmax.f32 %v359, %v360
      %v362 = vrot.slane %v361, 2
      %v363 = vmax.f32 %v361, %v362
      %v364 = vrot.slane %v363, 1
      %v365 = vmax.f32 %v363, %v364
      %v368 = vcombine.low %v358, %v365
      %v370 = vsub.f32 %v337, %v368
      %v371 = vmul.f32 %v370, 1.442695
      %v372 = vpow.pop %v371
      %v374 = vcombine.high %v372, %v372
      %v376 = vsel %vm351, %v372, 0.0
      %v377 = vrot.slane %v376, 4
      %v378 = vadd.f32 %v376, %v377
      %v379 = vrot.slane %v378, 2
      %v380 = vadd.f32 %v378, %v379
      %v381 = vrot.slane %v380, 1
      %v382 = vadd.f32 %v380, %v381
      %v383 = vsel %vm351, %v374, 0.0
      %v384 = vrot.slane %v383, 4
      %v385 = vadd.f32 %v383, %v384
      %v386 = vrot.slane %v385, 2
      %v387 = vadd.f32 %v385, %v386
      %v388 = vrot.slane %v387, 1
      %v389 = vadd.f32 %v387, %v388
      %v390 = vlog2.pop %v382
      %v391 = vmul.f32 %v390, 0.6931472
      %v392 = vlog2.pop %v389
      %v393 = vmul.f32 %v392, 0.6931472
      %v394 = vadd.f32 %v358, %v391
      %v395 = vadd.f32 %v365, %v393
      %v396 = vlaneseq
      %v397 = vshrl.u32 %v396, 7
      %v398 = vlaneseq
      %v399 = vshrl.u32 %v398, 7
      %v400 = vsub.s32 0, %v399
      %v401 = vrot.slane %v338, %v400
      %v402 = vlaneseq
      %v403 = vshrl.u32 %v402, 7
      %v404 = vsub.s32 1, %v403
      %v405 = vrot.slane %v338, %v404
      %vm406 = vcmp.eq.s32.totalorder %v397, %v401
      %vm407 = vcmp.eq.s32.totalorder %v397, %v405
      %v408 = vsel %vm406, %v337, 0.0
      %v409 = vsel %vm407, %v349, 0.0
      %v410 = vsel %vm351, %v408, 0.0
      %v411 = vrot.slane %v410, 4
      %v412 = vadd.f32 %v410, %v411
      %v413 = vrot.slane %v412, 2
      %v414 = vadd.f32 %v412, %v413
      %v415 = vrot.slane %v414, 1
      %v416 = vadd.f32 %v414, %v415
      %v417 = vsel %vm351, %v409, 0.0
      %v418 = vrot.slane %v417, 4
      %v419 = vadd.f32 %v417, %v418
      %v420 = vrot.slane %v419, 2
      %v421 = vadd.f32 %v419, %v420
      %v422 = vrot.slane %v421, 1
      %v423 = vadd.f32 %v421, %v422
      %vm424 = vcmp.ne.s32.totalorder %v338, 255
      %v425 = vsel %vm346, 1, 0
      %v426 = vsel %vm347, 1, 0
      %v427 = vcombine.low %v425, %v426
      %v429 = vunpack.c.l.s4 1966171168
      %v430 = vunpack.c.0.s8 %v429
      %v431 = vlaneseq
      %v432 = vshrl.u32 %v431, 7
      %v433 = vsub.s32 %v430, %v432
      %v434 = vrot.slane %v427, %v433
      %v436 = vunpack.c.l.s4 1966171168
      %v437 = vunpack.c.0.s8 %v436
      %v438 = vlaneseq
      %v439 = vshrl.u32 %v438, 7
      %v440 = vsub.s32 %v437, %v439
      %v441 = vrot.slane %v434, %v440
      %vm442 = vcmp.ne.s32.totalorder %v441, 0
      %vm443 = vmand %vm424, %vm442
      %v444 = vsub.f32 %v394, %v416
      %v445 = vsub.f32 %v395, %v423
      %v448 = vcombine.low %v444, %v445
      %v450 = vunpack.c.l.s4 1966171168
      %v451 = vunpack.c.0.s8 %v450
      %v452 = vlaneseq
      %v453 = vshrl.u32 %v452, 7
      %v454 = vsub.s32 %v451, %v453
      %v455 = vrot.slane %v448, %v454
      %v457 = vunpack.c.l.s4 1966171168
      %v458 = vunpack.c.0.s8 %v457
      %v459 = vlaneseq
      %v460 = vshrl.u32 %v459, 7
      %v461 = vsub.s32 %v458, %v460
      %v462 = vrot.slane %v455, %v461
      %v464 = vsel %vm443, %v462, 0.0
      %v465 = vlaneseq
      %vm466 = vcmp.ge.s32.totalorder %v465, 0
      %vm467 = vcmp.lt.s32.totalorder %v465, 256
      %vm468 = vmand %vm466, %vm467
      %469 = vst.msk [vmem:[%s312] sm:$0x3] %vm468, %v464
      %vm470 = vcmp.gt.f32.partialorder %v464, 0.35667494
      %v471 = vld [vmem:[%s317] sm:$0x3]
      %v472 = vsel %vm470, %v464, 0.0
      %v473 = vadd.f32 %v471, %v472
      %474 = vst.msk [vmem:[%s317] sm:$0x3] %vm468, %v473
      %v475 = vld [vmem:[%s321] sm:$0x3]
      %v476 = vsel %vm470, 1, 0
      %v477 = vcvt.s32.f32 %v476
      %v478 = vadd.f32 %v475, %v477
      %479 = vst.msk [vmem:[%s321] sm:$0x3] %vm468, %v478
      %v480 = vld [vmem:[%s325] sm:$0x3]
      %v481 = vsel %vm443, 1, 0
      %v482 = vcvt.s32.f32 %v481
      %v483 = vadd.f32 %v480, %v482
      %484 = vst.msk [vmem:[%s325] sm:$0x3] %vm468, %v483
      %s485 = smul.u32 2, %s22
      %p486 = scmp.lt.s32.totalorder %s21, 1
      %s487 = scalar_select %p486, %s21, 1
      %p488 = scmp.lt.s32.totalorder %s485, 1
      %s489 = scalar_select %p488, %s485, 1
      %s490 = smul.addr %s487, 2
      %s491 = sadd.s32 %s489, %s490
      %s492 = scalar_lea.vmem %s2, %s491
      %p493 = scmp.lt.s32.totalorder %s21, 1
      %s494 = scalar_select %p493, %s21, 1
      %s495 = smul.addr %s494, 2
      %s496 = scalar_lea.vmem %s3, %s495
      %p497 = scmp.lt.s32.totalorder %s21, 1
      %s498 = scalar_select %p497, %s21, 1
      %s499 = smul.addr %s498, 2
      %s500 = scalar_lea.vmem %s4, %s499
      %p501 = scmp.lt.s32.totalorder %s21, 1
      %s502 = scalar_select %p501, %s21, 1
      %s503 = smul.addr %s502, 2
      %s504 = scalar_lea.vmem %s5, %s503
      // Predicated region
      $region33: #{ohem_cross_entropy.1} parent=27 // pred_check
        %p505 = pneg %p105
      $region34: #{ohem_cross_entropy.1} parent=27 // pred_check_branch
        %507 = sbr.rel (%p505) target = $region36
      $region35: #{ohem_cross_entropy.1} parent=27 // pred_region
        %s508 = smul.u32 2, %s22
      $region36: #{ohem_cross_entropy.1} parent=27 // pred_fallthru
        _
      // Predicated region
      $region37: #{ohem_cross_entropy.1} parent=27 // pred_check
        %p509 = pneg %p131
      $region38: #{ohem_cross_entropy.1} parent=27 // pred_check_branch
        %511 = sbr.rel (%p509) target = $region40
      $region39: #{ohem_cross_entropy.1} parent=27 // pred_region
        _
      $region40: #{ohem_cross_entropy.1} parent=27 // pred_fallthru
        _
      // Predicated region
      $region41: #{ohem_cross_entropy.1} parent=27 // pred_check
        %p512 = pneg %p157
      $region42: #{ohem_cross_entropy.1} parent=27 // pred_check_branch
        %514 = sbr.rel (%p512) target = $region44
      $region43: #{ohem_cross_entropy.1} parent=27 // pred_region
        _
      $region44: #{ohem_cross_entropy.1} parent=27 // pred_fallthru
        _
      // Predicated region
      $region45: #{ohem_cross_entropy.1} parent=27 // pred_check
        %p515 = pneg %p183
      $region46: #{ohem_cross_entropy.1} parent=27 // pred_check_branch
        %517 = sbr.rel (%p515) target = $region48
      $region47: #{ohem_cross_entropy.1} parent=27 // pred_region
        _
      $region48: #{ohem_cross_entropy.1} parent=27 // pred_fallthru
        _
    $region28: #{ohem_cross_entropy.1} parent=5 // pred_fallthru
      _
    %p518 = scmp.le.s32.totalorder 2, %s12
    // Predicated region
    $region49: #{ohem_cross_entropy.1} parent=5 // pred_check
      %p519 = pneg %p518
    $region50: #{ohem_cross_entropy.1} parent=5 // pred_check_branch
      %521 = sbr.rel (%p519) target = $region52
    $region51: #{ohem_cross_entropy.1} parent=5 // pred_region
      %s522 = ssub.s32 %s12, 2
      // Predicated region
      $region53: #{ohem_cross_entropy.1} parent=51 // pred_check
        %p523 = pneg %p111
      $region54: #{ohem_cross_entropy.1} parent=51 // pred_check_branch
        %525 = sbr.rel (%p523) target = $region56
      $region55: #{ohem_cross_entropy.1} parent=51 // pred_region
        %s526 = smul.u32 2, %s24
        %p527 = scmp.lt.s32.totalorder %s23, 1
        %s528 = scalar_select %p527, %s23, 1
        %p529 = scmp.lt.s32.totalorder %s526, 1
        %s530 = scalar_select %p529, %s526, 1
        %s531 = smul.addr %s528, 2
        %s532 = sadd.s32 %s530, %s531
        %s533 = scalar_lea.vmem %s2, %s532
      $region56: #{ohem_cross_entropy.1} parent=51 // pred_fallthru
        _
      // Predicated region
      $region57: #{ohem_cross_entropy.1} parent=51 // pred_check
        %p534 = pneg %p137
      $region58: #{ohem_cross_entropy.1} parent=51 // pred_check_branch
        %536 = sbr.rel (%p534) target = $region60
      $region59: #{ohem_cross_entropy.1} parent=51 // pred_region
        %p537 = scmp.lt.s32.totalorder %s23, 1
        %s538 = scalar_select %p537, %s23, 1
        %s539 = smul.addr %s538, 2
        %s540 = scalar_lea.vmem %s3, %s539
      $region60: #{ohem_cross_entropy.1} parent=51 // pred_fallthru
        _
      // Predicated region
      $region61: #{ohem_cross_entropy.1} parent=51 // pred_check
        %p541 = pneg %p163
      $region62: #{ohem_cross_entropy.1} parent=51 // pred_check_branch
        %543 = sbr.rel (%p541) target = $region64
      $region63: #{ohem_cross_entropy.1} parent=51 // pred_region
        %p544 = scmp.lt.s32.totalorder %s23, 1
        %s545 = scalar_select %p544, %s23, 1
        %s546 = smul.addr %s545, 2
        %s547 = scalar_lea.vmem %s4, %s546
      $region64: #{ohem_cross_entropy.1} parent=51 // pred_fallthru
        _
      // Predicated region
      $region65: #{ohem_cross_entropy.1} parent=51 // pred_check
        %p548 = pneg %p189
      $region66: #{ohem_cross_entropy.1} parent=51 // pred_check_branch
        %550 = sbr.rel (%p548) target = $region68
      $region67: #{ohem_cross_entropy.1} parent=51 // pred_region
        %p551 = scmp.lt.s32.totalorder %s23, 1
        %s552 = scalar_select %p551, %s23, 1
        %s553 = smul.addr %s552, 2
        %s554 = scalar_lea.vmem %s5, %s553
      $region68: #{ohem_cross_entropy.1} parent=51 // pred_fallthru
        _
    $region52: #{ohem_cross_entropy.1} parent=5 // pred_fallthru
      _
  $region6: #{ohem_cross_entropy.1} parent=0 // loop_footer
    %s16 = sadd.s32 1, %s12
  $region7: #{ohem_cross_entropy.1} parent=0 // loop_footer_branch
    %11 = sbr.rel target = $region3
  $region8: #{ohem_cross_entropy.1} parent=0 // loop_exit
    _

</llo_original>
